<compile_context>
chip_gen: v7x
topology: tpu7x:2x2x1
jax: 0.10.0
libtpu: 0.0.40
codegen_flags: <defaults>
</compile_context>

<pallas_src>
import functools

import jax
import jax.numpy as jnp
from jax.experimental import pallas as pl
from jax.experimental.pallas import tpu as pltpu


def _circconv_kernel(x_ref, w_ref, b_ref, o_ref, slab_ref, *,
                     bt, c_in, n_len, ksize, dilation, pad):
    # x_ref   : (bt, C_in, N)
    # w_ref   : (C_out, K*C_in)      b_ref : (C_out, 1) f32
    # o_ref   : (bt, C_out, N)
    # slab_ref: (K*C_in, bt*N)  VMEM scratch -- im2col slab, batches on lanes.
    for b in range(bt):                       # bt is small and static
        c0 = b * n_len
        for k in range(ksize):
            r0 = k * c_in
            s = (k * dilation - pad) % n_len  # circular source offset
            # tap_k(batch b) == roll(x_b, -s, axis=-1): written as <= 2
            # full-sublane-range, lane-offset stores straight from x_ref
            # (no halo buffer, no in-register concatenate).
            slab_ref[r0:r0 + c_in, c0:c0 + (n_len - s)] = x_ref[b, :, s:n_len]
            if s:
                slab_ref[r0:r0 + c_in, c0 + (n_len - s):c0 + n_len] = (
                    x_ref[b, :, :s])
    # Single MXU contraction per grid step: (C_out, K*C_in) @ (K*C_in, bt*N),
    # f32 accumulation; bias folded in with one VPU add.
    acc = jnp.dot(w_ref[...], slab_ref[...], preferred_element_type=jnp.float32)
    res = (acc + b_ref[...]).astype(o_ref.dtype)        # (C_out, bt*N)
    for b in range(bt):
        o_ref[b, :, :] = res[:, b * n_len:(b + 1) * n_len]


def _round_up(v, m):
    return (v + m - 1) // m * m


def _tile_bytes(shape, itemsize):
    lead = 1
    for d in shape[:-2]:
        lead *= d
    r, c = shape[-2], shape[-1]
    return lead * _round_up(r, 8) * _round_up(c, 128) * itemsize


def _vmem_capacity_bytes():
    try:
        return int(pltpu.get_tpu_info().vmem_capacity_bytes)
    except Exception:
        return 64 * 1024 * 1024  # conservative: v7x per-TC capacity


def _pick_batch_tile(batch, c_in, n_len, itemsize):
    if batch <= 1:
        return 1
    # Keep >= 2 grid steps (>= 8 when the batch allows) for pipelining and
    # v7x's two TensorCores; keep each x block around <= 1 MiB.
    grid_floor = 8 if batch >= 8 else 2
    max_bt = max(1, batch // grid_floor)
    per_batch = _tile_bytes((c_in, n_len), itemsize)
    target = max(1, (1 << 20) // per_batch)
    best = 1
    for d in range(1, batch + 1):
        if batch % d == 0 and d <= max_bt and d <= target:
            best = d
    return best


def basic_conv_forward(x, weight, bias, *, n_adj=4, dilation=1,
                       batch_tile=None, io_dtype=None):
    """BasicConv forward. conv_type='grid' -> dilation=1, 'dgrid' -> dilation>=1.

    io_dtype: optional narrower dtype (e.g. jnp.bfloat16) for x/weight HBM I/O
    and MXU inputs (accumulation stays f32).  Off by default since it changes
    numerics vs. the f32 PyTorch module.
    """
    B, C_in, N = x.shape
    C_out, C_in_w, K = weight.shape
    assert C_in == C_in_w and K == 2 * n_adj + 1
    pad = n_adj * dilation
    if pad:
        assert N >= pad, "contour length must be >= n_adj * dilation (single wrap)"

    cdt = jnp.dtype(io_dtype) if io_dtype is not None else jnp.dtype(x.dtype)
    itemsize = cdt.itemsize

    bt = _pick_batch_tile(B, C_in, N, itemsize) if batch_tile is None else batch_tile
    assert B % bt == 0, "batch_tile must divide the batch"
    grid = (B // bt,)

    xin = x.astype(cdt)
    # w2[o, k*C_in + c] = weight[o, c, k]: contraction ordered (k, c) to match
    # the in-kernel im2col slab; flattened once in the wrapper.
    w2 = jnp.transpose(weight, (0, 2, 1)).reshape(C_out, K * C_in).astype(cdt)
    b2 = bias.reshape(C_out, 1).astype(jnp.float32)

    # Per-generation VMEM budgeting (v7x: 64 MiB/TC; v5e/v6e: 128 MiB).
    budget = int(_vmem_capacity_bytes() * 0.85)
    est = (2 * _tile_bytes((bt, C_in, N), itemsize)          # x block (dbl-buf)
           + 2 * _tile_bytes((bt, C_out, N), itemsize)       # out block
           + 2 * _tile_bytes((C_out, K * C_in), itemsize)    # weight
           + 2 * _tile_bytes((C_out, 1), 4)                  # bias (f32)
           + _tile_bytes((K * C_in, bt * N), itemsize))      # im2col scratch
    if est > budget:
        # TODO(synk): add N tiling with circular-halo DMAs for huge contours.
        raise ValueError("block too large for VMEM; reduce batch_tile or add N tiling")
    vmem_limit = int(min(budget, max(est + (8 << 20), 32 << 20)))

    kernel = functools.partial(
        _circconv_kernel, bt=bt, c_in=C_in, n_len=N,
        ksize=K, dilation=dilation, pad=pad)

    out = pl.pallas_call(
        kernel,
        out_shape=jax.ShapeDtypeStruct((B, C_out, N), cdt),
        grid_spec=pltpu.PrefetchScalarGridSpec(
            num_scalar_prefetch=0,
            grid=grid,
            in_specs=[
                pl.BlockSpec((bt, C_in, N), lambda i: (i, 0, 0)),
                pl.BlockSpec((C_out, K * C_in), lambda i: (0, 0)),
                pl.BlockSpec((C_out, 1), lambda i: (0, 0)),
            ],
            out_specs=pl.BlockSpec((bt, C_out, N), lambda i: (i, 0, 0)),
            scratch_shapes=[
                pltpu.VMEM((K * C_in, bt * N), cdt),   # im2col slab
            ],
        ),
        compiler_params=pltpu.CompilerParams(
            dimension_semantics=("parallel",),
            vmem_limit_bytes=vmem_limit,
        ),
    )(xin, w2, b2)
    return out


def _reference_conv(x, weight, bias, *, n_adj, dilation):
    pad = n_adj * dilation
    x_pad = (jnp.concatenate([x[..., -pad:], x, x[..., :pad]], axis=-1)
             if n_adj else x)
    out = jax.lax.conv_general_dilated(
        x_pad, weight,
        window_strides=(1,),
        padding="VALID",
        rhs_dilation=(dilation,),
        dimension_numbers=("NCH", "OIH", "NCH"),
        precision=jax.lax.Precision.HIGHEST,
    )
    return out + bias.reshape(1, -1, 1)


if __name__ == "__main__":
    key = jax.random.PRNGKey(0)
    cases = [
        # (conv_type, B, C_in, C_out, N, n_adj, dilation)
        ("grid",  2, 4, 4, 16, 4, 1),   # CircConv
        ("dgrid", 2, 4, 4, 16, 4, 2),   # DilatedCircConv
        ("grid",  4, 4, 8, 40, 4, 1),   # exercises batch_tile > 1 lane packing
    ]
    for conv_type, B, C_in, C_out, N, n_adj, dilation in cases:
        K = 2 * n_adj + 1
        key, kx, kw, kb = jax.random.split(key, 4)
        x = jax.random.normal(kx, (B, C_in, N), dtype=jnp.float32)
        fan_in = C_in * K
        bound = 1.0 / (fan_in ** 0.5)
        weight = jax.random.uniform(kw, (C_out, C_in, K), jnp.float32, -bound, bound)
        bias = jax.random.uniform(kb, (C_out,), jnp.float32, -bound, bound)

        out = basic_conv_forward(x, weight, bias, n_adj=n_adj, dilation=dilation)
        out = jax.block_until_ready(out)

        ref = _reference_conv(x, weight, bias, n_adj=n_adj, dilation=dilation)
        assert out.shape == (B, C_out, N), conv_type
        assert jnp.allclose(out, ref, atol=1e-4, rtol=1e-4), conv_type

    print("KERNEL_OK")
</pallas_src>

<mosaic_0001>
module attributes {stable_mosaic.version = 11 : i64} {
  func.func @_circconv_kernel(%arg0: i32, %arg1: memref<1x4x16xf32, #tpu.memory_space<vmem>>, %arg2: memref<4x36xf32, #tpu.memory_space<vmem>>, %arg3: memref<4x1xf32, #tpu.memory_space<vmem>>, %arg4: memref<1x4x16xf32, #tpu.memory_space<vmem>>, %arg5: memref<36x16xf32, #tpu.memory_space<vmem>>) attributes {dimension_semantics = [#tpu.dimension_semantics<parallel>], iteration_bounds = array<i64: 2>, scalar_prefetch = 0 : i64, scratch_operands = 1 : i64, tpu.core_type = #tpu.core_type<tc>, window_params = [{transform_indices = @transform_0, window_bounds = array<i64: 1, 4, 16>}, {pipeline_mode = #tpu.pipeline_mode<synchronous>, transform_indices = @transform_1, window_bounds = array<i64: 4, 36>}, {pipeline_mode = #tpu.pipeline_mode<synchronous>, transform_indices = @transform_2, window_bounds = array<i64: 4, 1>}, {transform_indices = @transform_3, window_bounds = array<i64: 1, 4, 16>}]} {
    %c0 = arith.constant 0 : index
    %c0_0 = arith.constant 0 : index
    %c12 = arith.constant 12 : index
    %0 = vector.load %arg1[%c0, %c0_0, %c12] : memref<1x4x16xf32, #tpu.memory_space<vmem>>, vector<1x4x4xf32>
    %1 = vector.shape_cast %0 : vector<1x4x4xf32> to vector<4x4xf32>
    %c0_1 = arith.constant 0 : index
    %c0_2 = arith.constant 0 : index
    %2 = vector.load %arg5[%c0_1, %c0_2] : memref<36x16xf32, #tpu.memory_space<vmem>>, vector<4x4xf32>
    tpu.vector_store %arg5[%c0_1, %c0_2], %1 {strides = array<i32>} : memref<36x16xf32, #tpu.memory_space<vmem>>, vector<4x4xf32>,
    %c0_3 = arith.constant 0 : index
    %c0_4 = arith.constant 0 : index
    %c0_5 = arith.constant 0 : index
    %3 = vector.load %arg1[%c0_3, %c0_4, %c0_5] : memref<1x4x16xf32, #tpu.memory_space<vmem>>, vector<1x4x12xf32>
    %4 = vector.shape_cast %3 : vector<1x4x12xf32> to vector<4x12xf32>
    %c0_6 = arith.constant 0 : index
    %c4 = arith.constant 4 : index
    %5 = vector.load %arg5[%c0_6, %c4] : memref<36x16xf32, #tpu.memory_space<vmem>>, vector<4x12xf32>
    tpu.vector_store %arg5[%c0_6, %c4], %4 {strides = array<i32>} : memref<36x16xf32, #tpu.memory_space<vmem>>, vector<4x12xf32>,
    %c0_7 = arith.constant 0 : index
    %c0_8 = arith.constant 0 : index
    %c13 = arith.constant 13 : index
    %6 = vector.load %arg1[%c0_7, %c0_8, %c13] : memref<1x4x16xf32, #tpu.memory_space<vmem>>, vector<1x4x3xf32>
    %7 = vector.shape_cast %6 : vector<1x4x3xf32> to vector<4x3xf32>
    %c4_9 = arith.constant 4 : index
    %c0_10 = arith.constant 0 : index
    %8 = vector.load %arg5[%c4_9, %c0_10] : memref<36x16xf32, #tpu.memory_space<vmem>>, vector<4x3xf32>
    tpu.vector_store %arg5[%c4_9, %c0_10], %7 {strides = array<i32>} : memref<36x16xf32, #tpu.memory_space<vmem>>, vector<4x3xf32>,
    %c0_11 = arith.constant 0 : index
    %c0_12 = arith.constant 0 : index
    %c0_13 = arith.constant 0 : index
    %9 = vector.load %arg1[%c0_11, %c0_12, %c0_13] : memref<1x4x16xf32, #tpu.memory_space<vmem>>, vector<1x4x13xf32>
    %10 = vector.shape_cast %9 : vector<1x4x13xf32> to vector<4x13xf32>
    %c4_14 = arith.constant 4 : index
    %c3 = arith.constant 3 : index
    %11 = vector.load %arg5[%c4_14, %c3] : memref<36x16xf32, #tpu.memory_space<vmem>>, vector<4x13xf32>
    tpu.vector_store %arg5[%c4_14, %c3], %10 {strides = array<i32>} : memref<36x16xf32, #tpu.memory_space<vmem>>, vector<4x13xf32>,
    %c0_15 = arith.constant 0 : index
    %c0_16 = arith.constant 0 : index
    %c14 = arith.constant 14 : index
    %12 = vector.load %arg1[%c0_15, %c0_16, %c14] : memref<1x4x16xf32, #tpu.memory_space<vmem>>, vector<1x4x2xf32>
    %13 = vector.shape_cast %12 : vector<1x4x2xf32> to vector<4x2xf32>
    %c8 = arith.constant 8 : index
    %c0_17 = arith.constant 0 : index
    %14 = vector.load %arg5[%c8, %c0_17] : memref<36x16xf32, #tpu.memory_space<vmem>>, vector<4x2xf32>
    tpu.vector_store %arg5[%c8, %c0_17], %13 {strides = array<i32>} : memref<36x16xf32, #tpu.memory_space<vmem>>, vector<4x2xf32>,
    %c0_18 = arith.constant 0 : index
    %c0_19 = arith.constant 0 : index
    %c0_20 = arith.constant 0 : index
    %15 = vector.load %arg1[%c0_18, %c0_19, %c0_20] : memref<1x4x16xf32, #tpu.memory_space<vmem>>, vector<1x4x14xf32>
    %16 = vector.shape_cast %15 : vector<1x4x14xf32> to vector<4x14xf32>
    %c8_21 = arith.constant 8 : index
    %c2 = arith.constant 2 : index
    %17 = vector.load %arg5[%c8_21, %c2] : memref<36x16xf32, #tpu.memory_space<vmem>>, vector<4x14xf32>
    tpu.vector_store %arg5[%c8_21, %c2], %16 {strides = array<i32>} : memref<36x16xf32, #tpu.memory_space<vmem>>, vector<4x14xf32>,
    %c0_22 = arith.constant 0 : index
    %c0_23 = arith.constant 0 : index
    %c15 = arith.constant 15 : index
    %18 = vector.load %arg1[%c0_22, %c0_23, %c15] : memref<1x4x16xf32, #tpu.memory_space<vmem>>, vector<1x4x1xf32>
    %19 = vector.shape_cast %18 : vector<1x4x1xf32> to vector<4x1xf32>
    %c12_24 = arith.constant 12 : index
    %c0_25 = arith.constant 0 : index
    %20 = vector.load %arg5[%c12_24, %c0_25] : memref<36x16xf32, #tpu.memory_space<vmem>>, vector<4x1xf32>
    tpu.vector_store %arg5[%c12_24, %c0_25], %19 {strides = array<i32>} : memref<36x16xf32, #tpu.memory_space<vmem>>, vector<4x1xf32>,
    %c0_26 = arith.constant 0 : index
    %c0_27 = arith.constant 0 : index
    %c0_28 = arith.constant 0 : index
    %21 = vector.load %arg1[%c0_26, %c0_27, %c0_28] : memref<1x4x16xf32, #tpu.memory_space<vmem>>, vector<1x4x15xf32>
    %22 = vector.shape_cast %21 : vector<1x4x15xf32> to vector<4x15xf32>
    %c12_29 = arith.constant 12 : index
    %c1 = arith.constant 1 : index
    %23 = vector.load %arg5[%c12_29, %c1] : memref<36x16xf32, #tpu.memory_space<vmem>>, vector<4x15xf32>
    tpu.vector_store %arg5[%c12_29, %c1], %22 {strides = array<i32>} : memref<36x16xf32, #tpu.memory_space<vmem>>, vector<4x15xf32>,
    %c0_30 = arith.constant 0 : index
    %c0_31 = arith.constant 0 : index
    %c0_32 = arith.constant 0 : index
    %24 = vector.load %arg1[%c0_30, %c0_31, %c0_32] : memref<1x4x16xf32, #tpu.memory_space<vmem>>, vector<1x4x16xf32>
    %25 = vector.shape_cast %24 : vector<1x4x16xf32> to vector<4x16xf32>
    %c16 = arith.constant 16 : index
    %c0_33 = arith.constant 0 : index
    %26 = vector.load %arg5[%c16, %c0_33] : memref<36x16xf32, #tpu.memory_space<vmem>>, vector<4x16xf32>
    tpu.vector_store %arg5[%c16, %c0_33], %25 {strides = array<i32>} : memref<36x16xf32, #tpu.memory_space<vmem>>, vector<4x16xf32>,
    %c0_34 = arith.constant 0 : index
    %c0_35 = arith.constant 0 : index
    %c1_36 = arith.constant 1 : index
    %27 = vector.load %arg1[%c0_34, %c0_35, %c1_36] : memref<1x4x16xf32, #tpu.memory_space<vmem>>, vector<1x4x15xf32>
    %28 = vector.shape_cast %27 : vector<1x4x15xf32> to vector<4x15xf32>
    %c20 = arith.constant 20 : index
    %c0_37 = arith.constant 0 : index
    %29 = vector.load %arg5[%c20, %c0_37] : memref<36x16xf32, #tpu.memory_space<vmem>>, vector<4x15xf32>
    tpu.vector_store %arg5[%c20, %c0_37], %28 {strides = array<i32>} : memref<36x16xf32, #tpu.memory_space<vmem>>, vector<4x15xf32>,
    %c0_38 = arith.constant 0 : index
    %c0_39 = arith.constant 0 : index
    %c0_40 = arith.constant 0 : index
    %30 = vector.load %arg1[%c0_38, %c0_39, %c0_40] : memref<1x4x16xf32, #tpu.memory_space<vmem>>, vector<1x4x1xf32>
    %31 = vector.shape_cast %30 : vector<1x4x1xf32> to vector<4x1xf32>
    %c20_41 = arith.constant 20 : index
    %c15_42 = arith.constant 15 : index
    %32 = vector.load %arg5[%c20_41, %c15_42] : memref<36x16xf32, #tpu.memory_space<vmem>>, vector<4x1xf32>
    tpu.vector_store %arg5[%c20_41, %c15_42], %31 {strides = array<i32>} : memref<36x16xf32, #tpu.memory_space<vmem>>, vector<4x1xf32>,
    %c0_43 = arith.constant 0 : index
    %c0_44 = arith.constant 0 : index
    %c2_45 = arith.constant 2 : index
    %33 = vector.load %arg1[%c0_43, %c0_44, %c2_45] : memref<1x4x16xf32, #tpu.memory_space<vmem>>, vector<1x4x14xf32>
    %34 = vector.shape_cast %33 : vector<1x4x14xf32> to vector<4x14xf32>
    %c24 = arith.constant 24 : index
    %c0_46 = arith.constant 0 : index
    %35 = vector.load %arg5[%c24, %c0_46] : memref<36x16xf32, #tpu.memory_space<vmem>>, vector<4x14xf32>
    tpu.vector_store %arg5[%c24, %c0_46], %34 {strides = array<i32>} : memref<36x16xf32, #tpu.memory_space<vmem>>, vector<4x14xf32>,
    %c0_47 = arith.constant 0 : index
    %c0_48 = arith.constant 0 : index
    %c0_49 = arith.constant 0 : index
    %36 = vector.load %arg1[%c0_47, %c0_48, %c0_49] : memref<1x4x16xf32, #tpu.memory_space<vmem>>, vector<1x4x2xf32>
    %37 = vector.shape_cast %36 : vector<1x4x2xf32> to vector<4x2xf32>
    %c24_50 = arith.constant 24 : index
    %c14_51 = arith.constant 14 : index
    %38 = vector.load %arg5[%c24_50, %c14_51] : memref<36x16xf32, #tpu.memory_space<vmem>>, vector<4x2xf32>
    tpu.vector_store %arg5[%c24_50, %c14_51], %37 {strides = array<i32>} : memref<36x16xf32, #tpu.memory_space<vmem>>, vector<4x2xf32>,
    %c0_52 = arith.constant 0 : index
    %c0_53 = arith.constant 0 : index
    %c3_54 = arith.constant 3 : index
    %39 = vector.load %arg1[%c0_52, %c0_53, %c3_54] : memref<1x4x16xf32, #tpu.memory_space<vmem>>, vector<1x4x13xf32>
    %40 = vector.shape_cast %39 : vector<1x4x13xf32> to vector<4x13xf32>
    %c28 = arith.constant 28 : index
    %c0_55 = arith.constant 0 : index
    %41 = vector.load %arg5[%c28, %c0_55] : memref<36x16xf32, #tpu.memory_space<vmem>>, vector<4x13xf32>
    tpu.vector_store %arg5[%c28, %c0_55], %40 {strides = array<i32>} : memref<36x16xf32, #tpu.memory_space<vmem>>, vector<4x13xf32>,
    %c0_56 = arith.constant 0 : index
    %c0_57 = arith.constant 0 : index
    %c0_58 = arith.constant 0 : index
    %42 = vector.load %arg1[%c0_56, %c0_57, %c0_58] : memref<1x4x16xf32, #tpu.memory_space<vmem>>, vector<1x4x3xf32>
    %43 = vector.shape_cast %42 : vector<1x4x3xf32> to vector<4x3xf32>
    %c28_59 = arith.constant 28 : index
    %c13_60 = arith.constant 13 : index
    %44 = vector.load %arg5[%c28_59, %c13_60] : memref<36x16xf32, #tpu.memory_space<vmem>>, vector<4x3xf32>
    tpu.vector_store %arg5[%c28_59, %c13_60], %43 {strides = array<i32>} : memref<36x16xf32, #tpu.memory_space<vmem>>, vector<4x3xf32>,
    %c0_61 = arith.constant 0 : index
    %c0_62 = arith.constant 0 : index
    %c4_63 = arith.constant 4 : index
    %45 = vector.load %arg1[%c0_61, %c0_62, %c4_63] : memref<1x4x16xf32, #tpu.memory_space<vmem>>, vector<1x4x12xf32>
    %46 = vector.shape_cast %45 : vector<1x4x12xf32> to vector<4x12xf32>
    %c32 = arith.constant 32 : index
    %c0_64 = arith.constant 0 : index
    %47 = vector.load %arg5[%c32, %c0_64] : memref<36x16xf32, #tpu.memory_space<vmem>>, vector<4x12xf32>
    tpu.vector_store %arg5[%c32, %c0_64], %46 {strides = array<i32>} : memref<36x16xf32, #tpu.memory_space<vmem>>, vector<4x12xf32>,
    %c0_65 = arith.constant 0 : index
    %c0_66 = arith.constant 0 : index
    %c0_67 = arith.constant 0 : index
    %48 = vector.load %arg1[%c0_65, %c0_66, %c0_67] : memref<1x4x16xf32, #tpu.memory_space<vmem>>, vector<1x4x4xf32>
    %49 = vector.shape_cast %48 : vector<1x4x4xf32> to vector<4x4xf32>
    %c32_68 = arith.constant 32 : index
    %c12_69 = arith.constant 12 : index
    %50 = vector.load %arg5[%c32_68, %c12_69] : memref<36x16xf32, #tpu.memory_space<vmem>>, vector<4x4xf32>
    tpu.vector_store %arg5[%c32_68, %c12_69], %49 {strides = array<i32>} : memref<36x16xf32, #tpu.memory_space<vmem>>, vector<4x4xf32>,
    %c0_70 = arith.constant 0 : index
    %c0_71 = arith.constant 0 : index
    %51 = vector.load %arg2[%c0_70, %c0_71] : memref<4x36xf32, #tpu.memory_space<vmem>>, vector<4x36xf32>
    %c0_72 = arith.constant 0 : index
    %c0_73 = arith.constant 0 : index
    %52 = vector.load %arg5[%c0_72, %c0_73] : memref<36x16xf32, #tpu.memory_space<vmem>>, vector<36x16xf32>
    %cst = arith.constant dense<0.000000e+00> : vector<4x16xf32>
    %53 = tpu.matmul %51, %52, %cst {dimension_numbers = #tpu.dot_dimension_numbers<[1], [0], [0], [1], [0, 0, 1, 1], [], []>} : vector<4x36xf32>, vector<36x16xf32>, vector<4x16xf32> -> vector<4x16xf32>
    %c0_74 = arith.constant 0 : index
    %c0_75 = arith.constant 0 : index
    %54 = vector.load %arg3[%c0_74, %c0_75] : memref<4x1xf32, #tpu.memory_space<vmem>>, vector<4x1xf32>
    %55 = vector.broadcast %54 : vector<4x1xf32> to vector<4x16xf32>
    %56 = arith.addf %53, %55 : vector<4x16xf32>
    %c0_76 = arith.constant 0 : index
    %c0_77 = arith.constant 0 : index
    %c0_78 = arith.constant 0 : index
    %57 = vector.load %arg4[%c0_76, %c0_77, %c0_78] : memref<1x4x16xf32, #tpu.memory_space<vmem>>, vector<1x4x16xf32>
    %58 = vector.shape_cast %57 : vector<1x4x16xf32> to vector<4x16xf32>
    %59 = vector.shape_cast %56 : vector<4x16xf32> to vector<1x4x16xf32>
    tpu.vector_store %arg4[%c0_76, %c0_77, %c0_78], %59 {strides = array<i32>} : memref<1x4x16xf32, #tpu.memory_space<vmem>>, vector<1x4x16xf32>,
    return
  }
  func.func @transform_0(%arg0: i32) -> (i32, i32, i32) {
    %c0_i32 = arith.constant 0 : i32
    %c0_i32_0 = arith.constant 0 : i32
    %c0_i32_1 = arith.constant 0 : i32
    return %arg0, %c0_i32, %c0_i32_0 : i32, i32, i32
  }
  func.func @transform_1(%arg0: i32) -> (i32, i32) {
    %c0_i32 = arith.constant 0 : i32
    %c0_i32_0 = arith.constant 0 : i32
    %c0_i32_1 = arith.constant 0 : i32
    return %c0_i32, %c0_i32_0 : i32, i32
  }
  func.func @transform_2(%arg0: i32) -> (i32, i32) {
    %c0_i32 = arith.constant 0 : i32
    %c0_i32_0 = arith.constant 0 : i32
    %c0_i32_1 = arith.constant 0 : i32
    return %c0_i32, %c0_i32_0 : i32, i32
  }
  func.func @transform_3(%arg0: i32) -> (i32, i32, i32) {
    %c0_i32 = arith.constant 0 : i32
    %c0_i32_0 = arith.constant 0 : i32
    %c0_i32_1 = arith.constant 0 : i32
    return %arg0, %c0_i32, %c0_i32_0 : i32, i32, i32
  }
}

</mosaic_0001>

<llo_original>
// kernel: tpu_custom_call.1
$region0: #{tpu_custom_call.1}
  #allocation0 [shape = 'u32[]', space=smem, size = 0x4, offset = 0x4, fixed_abs, tag = 'smem constant byte address 0x4 - core index']
  #allocation1 [shape = 'u32[144,128]{1,0:T(1,128)}', space=vmem, size = 0x12000, scoped, tag = 'internal scratch']
  #allocation2 [shape = 'f32[36,16]{1,0:T(8,128)}', space=vmem, size = 0x5000, scoped, tag = 'scratch operand']
  %s0 = inlined_call_operand.hbm [shape: f32[2,4,16], index: 0, kind: input, shape index: {}]
  %s1 = inlined_call_operand.vmem [shape: f32[4,36], index: 1, kind: input, shape index: {}]
  %s2 = inlined_call_operand.vmem [shape: f32[4,1], index: 2, kind: input, shape index: {}]
  %s3 = inlined_call_operand.hbm [shape: f32[2,4,16], index: 3, kind: output, shape index: {}]
  %s4 = sld [smem:[#allocation0]]
  $region49: #{tpu_custom_call.1} parent=0
    _
  %s6 = ssub.s32 1, %s4
  %s7 = scalar_select 0, %s6, %s4
  $region1: #{tpu_custom_call.1} parent=0
    #allocation3 [shape = 'u8[4096]{0}', space=vmem, size = 0x1000, scoped, tag = 'input window, operand 0']
    #allocation4 [shape = 's32[2]{0}', space=sflag, size = 0x8, scoped, tag = 'scoped memory for tpu_custom_call.1']
    #allocation5 [shape = 's32[2]{0}', space=sflag, size = 0x8, scoped, tag = 'scoped memory for tpu_custom_call.1']
    #allocation6 [shape = 'u8[4096]{0}', space=vmem, size = 0x1000, scoped, tag = 'output window, operand 0']
    %8 = vsyncpa [#allocation4], 0
    %s9 = scalar_lea.sflag [#allocation4], 1
    %10 = vsyncpa %s9, 0
    %11 = vsyncpa [#allocation5], 0
    %s12 = scalar_lea.sflag [#allocation5], 1
    %13 = vsyncpa %s12, 0
    loop: start=0, step=1, limit=4
    $region2: #{tpu_custom_call.1} parent=1 // loop_pre_header
      _
    $region3: #{tpu_custom_call.1} parent=1 // loop_header
      %s15 = sphi 0, %s19
      %p16 = scmp.ge.s32.totalorder %s15, 4
      %s25 = sphi 0, %s27
      %s28 = sphi 0, %s25
      %s29 = sphi 0, %s28
      %s45 = sphi 0, %s29
      %s49 = sphi 0, %s49
      %s51 = sphi 0, %s49
      %s52 = sphi 0, %s51
      %s66 = sphi 0, %s52
      %s70 = sphi 0, %s70
      %s72 = sphi 0, %s70
      %s73 = sphi 0, %s72
      %s87 = sphi 0, %s73
      %s93 = sphi 0, %s95
      %s96 = sphi 0, %s93
      %s97 = sphi 0, %s96
      %s113 = sphi 0, %s97
    $region4: #{tpu_custom_call.1} parent=1 // loop_header_branch
      %18 = sbr.rel (%p16) target = $region8
    $region5: #{tpu_custom_call.1} parent=1 // loop_body
      %s20 = ssub.s32 %s15, 1
      %s21 = ssub.s32 %s15, 2
      %s22 = sadd.s32 %s15, 1
      %s23 = ssub.s32 %s15, %s22
      %p24 = scmp.eq.s32.totalorder %s23, 0
      %s26 = sadd.s32 %s25, 1
      %s27 = scalar_select %p24, %s25, %s26
      %p30 = pneg %p24
      %p31 = scmp.eq.s32.totalorder %s15, 1
      %p32 = por %p30, %p31
      %p33 = scmp.ne.s32.totalorder %s25, %s28
      %p34 = scmp.eq.s32.totalorder %s15, 0
      %p35 = por %p33, %p34
      %p36 = scmp.ne.s32.totalorder %s25, %s28
      %p37 = scmp.eq.s32.totalorder %s20, 1
      %p38 = por %p36, %p37
      %p39 = scmp.ne.s32.totalorder %s28, %s29
      %p40 = scmp.eq.s32.totalorder %s20, 0
      %p41 = por %p39, %p40
      %p42 = scmp.ne.s32.totalorder %s28, %s29
      %p43 = scmp.eq.s32.totalorder %s21, 1
      %p44 = por %p42, %p43
      %p46 = scmp.ne.s32.totalorder %s29, %s45
      %p47 = scmp.eq.s32.totalorder %s21, 0
      %p48 = por %p46, %p47
      %s50 = sadd.s32 %s49, 1
      %p53 = scmp.eq.s32.totalorder %s15, 1
      %p54 = scmp.ne.s32.totalorder %s49, %s51
      %p55 = scmp.eq.s32.totalorder %s15, 0
      %p56 = por %p54, %p55
      %p57 = scmp.ne.s32.totalorder %s49, %s51
      %p58 = scmp.eq.s32.totalorder %s20, 1
      %p59 = por %p57, %p58
      %p60 = scmp.ne.s32.totalorder %s51, %s52
      %p61 = scmp.eq.s32.totalorder %s20, 0
      %p62 = por %p60, %p61
      %p63 = scmp.ne.s32.totalorder %s51, %s52
      %p64 = scmp.eq.s32.totalorder %s21, 1
      %p65 = por %p63, %p64
      %p67 = scmp.ne.s32.totalorder %s52, %s66
      %p68 = scmp.eq.s32.totalorder %s21, 0
      %p69 = por %p67, %p68
      %s71 = sadd.s32 %s70, 1
      %p74 = scmp.eq.s32.totalorder %s15, 1
      %p75 = scmp.ne.s32.totalorder %s70, %s72
      %p76 = scmp.eq.s32.totalorder %s15, 0
      %p77 = por %p75, %p76
      %p78 = scmp.ne.s32.totalorder %s70, %s72
      %p79 = scmp.eq.s32.totalorder %s20, 1
      %p80 = por %p78, %p79
      %p81 = scmp.ne.s32.totalorder %s72, %s73
      %p82 = scmp.eq.s32.totalorder %s20, 0
      %p83 = por %p81, %p82
      %p84 = scmp.ne.s32.totalorder %s72, %s73
      %p85 = scmp.eq.s32.totalorder %s21, 1
      %p86 = por %p84, %p85
      %p88 = scmp.ne.s32.totalorder %s73, %s87
      %p89 = scmp.eq.s32.totalorder %s21, 0
      %p90 = por %p88, %p89
      %s91 = ssub.s32 %s15, %s22
      %p92 = scmp.eq.s32.totalorder %s91, 0
      %s94 = sadd.s32 %s93, 1
      %s95 = scalar_select %p92, %s93, %s94
      %p98 = pneg %p92
      %p99 = scmp.eq.s32.totalorder %s15, 1
      %p100 = por %p98, %p99
      %p101 = scmp.ne.s32.totalorder %s93, %s96
      %p102 = scmp.eq.s32.totalorder %s15, 0
      %p103 = por %p101, %p102
      %p104 = scmp.ne.s32.totalorder %s93, %s96
      %p105 = scmp.eq.s32.totalorder %s20, 1
      %p106 = por %p104, %p105
      %p107 = scmp.ne.s32.totalorder %s96, %s97
      %p108 = scmp.eq.s32.totalorder %s20, 0
      %p109 = por %p107, %p108
      %p110 = scmp.ne.s32.totalorder %s96, %s97
      %p111 = scmp.eq.s32.totalorder %s21, 1
      %p112 = por %p110, %p111
      %p114 = scmp.ne.s32.totalorder %s97, %s113
      %p115 = scmp.eq.s32.totalorder %s21, 0
      %p116 = por %p114, %p115
      %p117 = scmp.le.s32.totalorder 1, %s15
      %p118 = scmp.lt.s32.totalorder %s15, 3
      %p119 = pnand %p117, %p118
      %p120 = pneg %p119
      // Predicated region
      $region9: #{tpu_custom_call.1} parent=5 // pred_check
        _
      $region10: #{tpu_custom_call.1} parent=5 // pred_check_branch
        %122 = sbr.rel (%p119) target = $region12
      $region11: #{tpu_custom_call.1} parent=5 // pred_region
        %s123 = ssub.s32 %s15, 1
        // Predicated region
        $region13: #{tpu_custom_call.1} parent=11 // pred_check
          %p124 = pneg %p62
        $region14: #{tpu_custom_call.1} parent=11 // pred_check_branch
          %126 = sbr.rel (%p124) target = $region16
        $region15: #{tpu_custom_call.1} parent=11 // pred_region
          _
        $region16: #{tpu_custom_call.1} parent=11 // pred_fallthru
          _
        // Predicated region
        $region17: #{tpu_custom_call.1} parent=11 // pred_check
          %p127 = pneg %p83
        $region18: #{tpu_custom_call.1} parent=11 // pred_check_branch
          %129 = sbr.rel (%p127) target = $region20
        $region19: #{tpu_custom_call.1} parent=11 // pred_region
          _
        $region20: #{tpu_custom_call.1} parent=11 // pred_fallthru
          _
      $region12: #{tpu_custom_call.1} parent=5 // pred_fallthru
        _
      %p130 = scmp.lt.s32.totalorder %s15, 2
      // Predicated region
      $region21: #{tpu_custom_call.1} parent=5 // pred_check
        %p131 = pneg %p130
      $region22: #{tpu_custom_call.1} parent=5 // pred_check_branch
        %133 = sbr.rel (%p131) target = $region24
      $region23: #{tpu_custom_call.1} parent=5 // pred_region
        // Predicated region
        $region25: #{tpu_custom_call.1} parent=23 // pred_check
          %p134 = pneg %p35
        $region26: #{tpu_custom_call.1} parent=23 // pred_check_branch
          %136 = sbr.rel (%p134) target = $region28
        $region27: #{tpu_custom_call.1} parent=23 // pred_region
          %s137 = sand.u32 %s25, 1
          %s138 = scalar_lea.sflag [#allocation4], %s137
          %s139 = sand.u32 %s25, 1
          %s140 = smul.addr %s139, 4
          %s141 = scalar_lea.vmem [#allocation3], %s140
          %s143 = ssub.s32 64, 64
          %144 = vsyncadd %s138, %s143
          %s145 = smul.addr %s15, 64
          %s146 = scalar_lea.hbm %s0, %s145
          %s148 = sshll.u32 %s141, 4
          %s149 = int_to_ptr.vmem [resolvable:$true] %s148
          %151 = dma.hbm_to_vmem [thread:$0]  %s146, 64, %s149, %s138
        $region28: #{tpu_custom_call.1} parent=23 // pred_fallthru
          _
      $region24: #{tpu_custom_call.1} parent=5 // pred_fallthru
        _
      %p152 = scmp.le.s32.totalorder 1, %s15
      %p153 = scmp.lt.s32.totalorder %s15, 3
      %p154 = pnand %p152, %p153
      %p155 = pneg %p154
      // Predicated region
      $region29: #{tpu_custom_call.1} parent=5 // pred_check
        _
      $region30: #{tpu_custom_call.1} parent=5 // pred_check_branch
        %157 = sbr.rel (%p154) target = $region32
      $region31: #{tpu_custom_call.1} parent=5 // pred_region
        %s158 = ssub.s32 %s15, 1
        %s159 = sand.u32 %s28, 1
        %s160 = scalar_lea.sflag [#allocation4], %s159
        %s161 = sand.u32 %s28, 1
        %s162 = smul.addr %s161, 4
        %s163 = scalar_lea.vmem [#allocation3], %s162
        // Predicated region
        $region33: #{tpu_custom_call.1} parent=31 // pred_check
          %p164 = pneg %p41
        $region34: #{tpu_custom_call.1} parent=31 // pred_check_branch
          %166 = sbr.rel (%p164) target = $region36
        $region35: #{tpu_custom_call.1} parent=31 // pred_region
          %167 = dma.done %s160, 64
        $region36: #{tpu_custom_call.1} parent=31 // pred_fallthru
          _
        %s168 = sand.u32 %s28, 1
        %s169 = scalar_lea.sflag [#allocation4], %s168
        %s170 = sand.u32 %s28, 1
        %s171 = smul.addr %s170, 4
        %s172 = scalar_lea.vmem [#allocation3], %s171
        %p173 = pneg %p41
        %p174 = pneg %p38
        %p175 = pneg %p62
        %p176 = pneg %p59
        %p177 = pneg %p83
        %p178 = pneg %p80
        %p179 = pneg %p109
        %p180 = pneg %p106
        %s181 = sand.u32 %s96, 1
        %s182 = scalar_lea.sflag [#allocation5], %s181
        %s183 = sand.u32 %s96, 1
        %s184 = smul.addr %s183, 4
        %s185 = scalar_lea.vmem [#allocation6], %s184
        %v186 = vld [vmem:[%s163] sm:$0xf]
        %188 = vrot.lane.b32.xlu0 %v186, 116
        %v189 = vpop.permute.xlu0 %188
        %vm191 = vcmask 27648
        %192 = vst.msk [vmem:[#allocation2] sm:$0xf] %vm191, %v189
        %v193 = vld [vmem:[%s163] sm:$0xf]
        %195 = vrot.lane.b32.xlu0 %v193, 4
        %v196 = vpop.permute.xlu0 %195
        %vm198 = vcmask 125984
        %199 = vst.msk [vmem:[#allocation2] sm:$0xf] %vm198, %v196
        %v200 = vld [vmem:[%s163] sm:$0xf]
        %202 = vrot.lane.b32.xlu0 %v200, 115
        %v203 = vpop.permute.xlu0 %202
        %vm205 = vcmask 19456
        %206 = vst.msk [vmem:[#allocation2 + $0x4] sm:$0xf] %vm205, %v203
        %v207 = vld [vmem:[%s163] sm:$0xf]
        %209 = vrot.lane.b32.xlu0 %v207, 3
        %v210 = vpop.permute.xlu0 %209
        %vm212 = vcmask 125976
        %213 = vst.msk [vmem:[#allocation2 + $0x4] sm:$0xf] %vm212, %v210
        %v214 = vld [vmem:[%s163] sm:$0xf]
        %216 = vrot.lane.b32.xlu0 %v214, 114
        %v217 = vpop.permute.xlu0 %216
        %vm219 = vcmask 11264
        %220 = vst.msk [vmem:[#allocation2 + $0x8] sm:$0xf] %vm219, %v217
        %v221 = vld [vmem:[%s163] sm:$0xf]
        %223 = vrot.lane.b32.xlu0 %v221, 2
        %v224 = vpop.permute.xlu0 %223
        %vm226 = vcmask 125968
        %227 = vst.msk [vmem:[#allocation2 + $0x8] sm:$0xf] %vm226, %v224
        %v228 = vld [vmem:[%s163] sm:$0xf]
        %230 = vrot.lane.b32.xlu0 %v228, 113
        %v231 = vpop.permute.xlu0 %230
        %vm233 = vcmask 3072
        %234 = vst.msk [vmem:[#allocation2 + $0xc] sm:$0xf] %vm233, %v231
        %v235 = vld [vmem:[%s163] sm:$0xf]
        %237 = vrot.lane.b32.xlu0 %v235, 1
        %v238 = vpop.permute.xlu0 %237
        %vm240 = vcmask 125960
        %241 = vst.msk [vmem:[#allocation2 + $0xc] sm:$0xf] %vm240, %v238
        %v242 = vld [vmem:[%s163] sm:$0xf]
        %vm243 = vcmask 125952
        %244 = vst.msk [vmem:[#allocation2 + $0x10] sm:$0xf] %vm243, %v242
        %v245 = vld [vmem:[%s163] sm:$0xf]
        %247 = vrot.lane.b32.xlu0 %v245, 127
        %v248 = vpop.permute.xlu0 %247
        %vm250 = vcmask 117760
        %251 = vst.msk [vmem:[#allocation2 + $0x14] sm:$0xf] %vm250, %v248
        %v252 = vld [vmem:[%s163] sm:$0xf]
        %254 = vrot.lane.b32.xlu0 %v252, 15
        %v255 = vpop.permute.xlu0 %254
        %vm257 = vcmask 126072
        %258 = vst.msk [vmem:[#allocation2 + $0x14] sm:$0xf] %vm257, %v255
        %v259 = vld [vmem:[%s163] sm:$0xf]
        %261 = vrot.lane.b32.xlu0 %v259, 126
        %v262 = vpop.permute.xlu0 %261
        %vm264 = vcmask 109568
        %265 = vst.msk [vmem:[#allocation2 + $0x18] sm:$0xf] %vm264, %v262
        %v266 = vld [vmem:[%s163] sm:$0xf]
        %268 = vrot.lane.b32.xlu0 %v266, 14
        %v269 = vpop.permute.xlu0 %268
        %vm271 = vcmask 126064
        %272 = vst.msk [vmem:[#allocation2 + $0x18] sm:$0xf] %vm271, %v269
        %v273 = vld [vmem:[%s163] sm:$0xf]
        %275 = vrot.lane.b32.xlu0 %v273, 125
        %v276 = vpop.permute.xlu0 %275
        %vm278 = vcmask 101376
        %279 = vst.msk [vmem:[#allocation2 + $0x1c] sm:$0xf] %vm278, %v276
        %v280 = vld [vmem:[%s163] sm:$0xf]
        %282 = vrot.lane.b32.xlu0 %v280, 13
        %v283 = vpop.permute.xlu0 %282
        %vm285 = vcmask 126056
        %286 = vst.msk [vmem:[#allocation2 + $0x1c] sm:$0xf] %vm285, %v283
        %v287 = vld [vmem:[%s163] sm:$0xf]
        %289 = vrot.lane.b32.xlu0 %v287, 124
        %v290 = vpop.permute.xlu0 %289
        %vm292 = vcmask 93184
        %293 = vst.msk [vmem:[#allocation2 + $0x20] sm:$0xf] %vm292, %v290
        %v294 = vld [vmem:[%s163] sm:$0xf]
        %296 = vrot.lane.b32.xlu0 %v294, 12
        %v297 = vpop.permute.xlu0 %296
        %vm299 = vcmask 126048
        %300 = vst.msk [vmem:[#allocation2 + $0x20] sm:$0xf] %vm299, %v297
        %v301 = vld [vmem:[%s1] sm:$0xf]
        %v302 = vld [vmem:[#allocation2] sm:$0xff]
        %v303 = vld [vmem:[#allocation2 + $0x8] sm:$0xff]
        %v304 = vld [vmem:[#allocation2 + $0x10] sm:$0xff]
        %v305 = vld [vmem:[#allocation2 + $0x18] sm:$0xff]
        %v306 = vld [vmem:[#allocation2 + $0x20] sm:$0xf]
        %v307 = vld [vmem:[%s2] sm:$0xf]
        %309 = vset.pattern.permute.xlu0 0
        %310 = vperm.xlu0 %309, %v307
        %v311 = vpop.permute.xlu0 %310
        %vm313 = vcmask 293888
        %v315 = vsel %vm313, %v301, 0
        %vm317 = vcmask 1043456
        %v319 = vsel %vm317, %v306, 0
        %321 = vmatprep.subr.mxu0 0.0
        %322 = vmatpush1.msra.mxu0 %v302
        %323 = vmatprep.subr.mxu0 0.0
        %324 = vmatpush1.msra.mxu0 %v303
        %325 = vmatprep.subr.mxu0 0.0
        %326 = vmatpush1.msra.mxu0 %v304
        %327 = vmatprep.subr.mxu0 0.0
        %328 = vmatpush1.msra.mxu0 %v305
        %329 = vmatprep.subr.mxu0 0.0
        %330 = vmatpush1.msra.mxu0 %v319
        %331 = vmatprep.subr.mxu0 0.0
        %332 = vmatpush1.msra.mxu0 0.0
        %333 = vmatprep.subr.mxu0 0.0
        %334 = vmatpush1.msra.mxu0 0.0
        %335 = vmatprep.subr.mxu0 0.0
        %336 = vmatpush1.msra.mxu0 0.0
        %337 = vmatprep.subr.mxu0 0.0
        %338 = vmatpush1.msra.mxu0 0.0
        %339 = vmatprep.subr.mxu0 0.0
        %340 = vmatpush1.msra.mxu0 0.0
        %341 = vmatprep.subr.mxu0 0.0
        %342 = vmatpush1.msra.mxu0 0.0
        %343 = vmatprep.subr.mxu0 0.0
        %344 = vmatpush1.msra.mxu0 0.0
        %345 = vmatprep.subr.mxu0 0.0
        %346 = vmatpush1.msra.mxu0 0.0
        %347 = vmatprep.subr.mxu0 0.0
        %348 = vmatpush1.msra.mxu0 0.0
        %349 = vmatprep.subr.mxu0 0.0
        %350 = vmatpush1.msra.mxu0 0.0
        %351 = vmatprep.subr.mxu0 0.0
        %352 = vmatpush1.msra.mxu0 0.0
        %353 = vmatprep.subr.mxu0 0.0
        %354 = vmatpush1.msra.mxu0 0.0
        %355 = vmatprep.subr.mxu0 0.0
        %356 = vmatpush1.msra.mxu0 0.0
        %357 = vmatprep.subr.mxu0 0.0
        %358 = vmatpush1.msra.mxu0 0.0
        %359 = vmatprep.subr.mxu0 0.0
        %360 = vmatpush1.msra.mxu0 0.0
        %361 = vmatprep.subr.mxu0 0.0
        %362 = vmatpush1.msra.mxu0 0.0
        %363 = vmatprep.subr.mxu0 0.0
        %364 = vmatpush1.msra.mxu0 0.0
        %365 = vmatprep.subr.mxu0 0.0
        %366 = vmatpush1.msra.mxu0 0.0
        %367 = vmatprep.subr.mxu0 0.0
        %368 = vmatpush1.msra.mxu0 0.0
        %369 = vmatprep.subr.mxu0 0.0
        %370 = vmatpush1.msra.mxu0 0.0
        %371 = vmatprep.subr.mxu0 0.0
        %372 = vmatpush1.msra.mxu0 0.0
        %373 = vmatprep.subr.mxu0 0.0
        %374 = vmatpush1.msra.mxu0 0.0
        %375 = vmatprep.subr.mxu0 0.0
        %376 = vmatpush1.msra.mxu0 0.0
        %377 = vmatprep.subr.mxu0 0.0
        %378 = vmatpush1.msra.mxu0 0.0
        %379 = vmatprep.subr.mxu0 0.0
        %380 = vmatpush1.msra.mxu0 0.0
        %381 = vmatprep.subr.mxu0 0.0
        %382 = vmatpush1.msra.mxu0 0.0
        %383 = vmatprep.subr.mxu0 0.0
        %384 = vmatpush1.msra.mxu0 0.0
        %385 = vmatprep.mubr.f32.mxu0 0.0
        %386 = vmatmul.mubr.f32.gmra.mrb[0].mxu0 %v315
        %v387 = vpop.f32.mrb[0].mxu0
        %v388 = vadd.f32 %v311, %v387
        %v389 = vpop.f32.mrb[0].mxu0
        %390 = vdwg.mxu0
        %391 = vst.msk [vmem:[%s185] sm:$0xf] %vm243, %v388
        %s392 = sand.u32 %s96, 1
        %s393 = scalar_lea.sflag [#allocation5], %s392
        %s394 = sand.u32 %s96, 1
        %s395 = smul.addr %s394, 4
        %s396 = scalar_lea.vmem [#allocation6], %s395
        // Predicated region
        $region37: #{tpu_custom_call.1} parent=31 // pred_check
          %p397 = pneg %p106
        $region38: #{tpu_custom_call.1} parent=31 // pred_check_branch
          %399 = sbr.rel (%p397) target = $region40
        $region39: #{tpu_custom_call.1} parent=31 // pred_region
          %s401 = ssub.s32 64, 64
          %402 = vsyncadd %s393, %s401
          %s403 = smul.addr %s20, 64
          %s404 = scalar_lea.hbm %s3, %s403
          %s406 = sshll.u32 %s396, 4
          %s407 = int_to_ptr.vmem [resolvable:$true] %s406
          %409 = dma.vmem_to_hbm [thread:$0]  %s407, 64, %s404, %s393
        $region40: #{tpu_custom_call.1} parent=31 // pred_fallthru
          _
      $region32: #{tpu_custom_call.1} parent=5 // pred_fallthru
        _
      %p410 = scmp.le.s32.totalorder 2, %s15
      // Predicated region
      $region41: #{tpu_custom_call.1} parent=5 // pred_check
        %p411 = pneg %p410
      $region42: #{tpu_custom_call.1} parent=5 // pred_check_branch
        %413 = sbr.rel (%p411) target = $region44
      $region43: #{tpu_custom_call.1} parent=5 // pred_region
        %s414 = ssub.s32 %s15, 2
        // Predicated region
        $region45: #{tpu_custom_call.1} parent=43 // pred_check
          %p415 = pneg %p112
        $region46: #{tpu_custom_call.1} parent=43 // pred_check_branch
          %417 = sbr.rel (%p415) target = $region48
        $region47: #{tpu_custom_call.1} parent=43 // pred_region
          %s418 = sand.u32 %s97, 1
          %s419 = scalar_lea.sflag [#allocation5], %s418
          %s420 = sand.u32 %s97, 1
          %s421 = smul.addr %s420, 4
          %s422 = scalar_lea.vmem [#allocation6], %s421
          %423 = dma.done %s419, 64
        $region48: #{tpu_custom_call.1} parent=43 // pred_fallthru
          _
      $region44: #{tpu_custom_call.1} parent=5 // pred_fallthru
        _
    $region6: #{tpu_custom_call.1} parent=1 // loop_footer
      %s19 = sadd.s32 1, %s15
    $region7: #{tpu_custom_call.1} parent=1 // loop_footer_branch
      %14 = sbr.rel target = $region3
    $region8: #{tpu_custom_call.1} parent=1 // loop_exit
      _
    %424 = vsyncpa [#allocation4], 1
    %s425 = scalar_lea.sflag [#allocation4], 1
    %426 = vsyncpa %s425, 1
    %427 = vsyncpa [#allocation5], 1
    %s428 = scalar_lea.sflag [#allocation5], 1
    %429 = vsyncpa %s428, 1

</llo_original>
